<compile_context>
chip_gen: v6e
topology: v6e:2x2x1
jax: 0.10.0
libtpu: 0.0.40
codegen_flags: <defaults>
</compile_context>

<pallas_src>
import jax
import jax.numpy as jnp
from jax.experimental import pallas as pl
from jax.experimental.pallas import tpu as pltpu

SMOOTHING = 0.1
CONFIDENCE = 1.0 - SMOOTHING


def _ls_ce_kernel(col_ref, x_ref, tgt_ref, loss_ref):
    # col_ref:  (1, C)       int32 class indices (constant block, loaded once)
    # x_ref:    (TILE_N, C)  logits tile
    # tgt_ref:  (TILE_N, 1)  int32 labels tile
    # loss_ref: (TILE_N, 1)  f32 per-row loss tile (distinct block per step)
    x = x_ref[...].astype(jnp.float32)                       # (T, C)
    c = x.shape[-1]
    tgt = tgt_ref[...]                                        # (T, 1)
    col = col_ref[...]                                        # (1, C)

    # Numerically-stable logsumexp over the class (lane) axis.
    m = jnp.max(x, axis=-1, keepdims=True)                    # (T, 1)
    lse = m + jnp.log(jnp.sum(jnp.exp(x - m), axis=-1, keepdims=True))

    # loss_r = lse_r - CONF * x[r, target_r] - (SMOOTHING/C) * sum_c x[r, c]
    sum_x = jnp.sum(x, axis=-1, keepdims=True)                 # (T, 1)
    x_tgt = jnp.sum(jnp.where(col == tgt, x, 0.0),
                    axis=-1, keepdims=True)                    # (T, 1)

    loss_ref[...] = (lse
                     - jnp.float32(CONFIDENCE) * x_tgt
                     - jnp.float32(SMOOTHING / c) * sum_x)


def _vmem_limit_bytes():
    # ~80% of physical VMEM, capped at 100 MiB (v5e/v6e have 128 MiB, v7x 64).
    cap = None
    try:
        cap = pltpu.get_tpu_info().vmem_capacity_bytes
    except Exception:
        cap = None
    if not cap:
        cap = 64 << 20  # conservative fallback = v7x physical VMEM
    return min(int(cap * 0.8), 100 << 20)


def _choose_tile_n(n, c, in_itemsize, vmem_limit):
    # Budget what actually lives in VMEM per tile row:
    #   * double-buffered input tile rows:           2 * C * itemsize
    #   * ~5 full-width f32 temporaries (x_f32, x-m, exp, mask/select, ...)
    #   * lane-padded (T,1) per-row temporaries + label + output blocks:
    #     ~4 KiB / row.
    # Keep the total under ~60% of vmem_limit; cap by bytes, not rows.
    per_row = c * (2 * in_itemsize + 5 * 4) + 4096
    budget = int(vmem_limit * 0.6)
    t = max(8, (budget // per_row) // 8 * 8)
    n_pad = ((n + 7) // 8) * 8
    return min(t, n_pad)


def label_smoothing_cross_entropy(x, target, *, tile_n=None):
    """x: (N, C) float logits, target: (N,) int labels -> scalar f32 loss."""
    n, c = x.shape
    tgt2d = target.astype(jnp.int32).reshape(n, 1)
    col_ids = jnp.arange(c, dtype=jnp.int32).reshape(1, c)

    vmem_limit = _vmem_limit_bytes()
    if tile_n is None:
        tile_n = _choose_tile_n(n, c, jnp.dtype(x.dtype).itemsize, vmem_limit)
    num_tiles = pl.cdiv(n, tile_n)

    cost = pl.CostEstimate(
        flops=6 * n * c,
        transcendentals=n * c + n,                    # exp per logit + log per row
        bytes_accessed=n * c * jnp.dtype(x.dtype).itemsize + 8 * n + 4 * c,
    )

    row_loss = pl.pallas_call(
        _ls_ce_kernel,
        out_shape=jax.ShapeDtypeStruct((n, 1), jnp.float32),
        grid=(num_tiles,),
        in_specs=[
            pl.BlockSpec((1, c), lambda i: (0, 0)),        # class ids (load once)
            pl.BlockSpec((tile_n, c), lambda i: (i, 0)),   # logits tile
            pl.BlockSpec((tile_n, 1), lambda i: (i, 0)),   # labels tile
        ],
        out_specs=pl.BlockSpec((tile_n, 1), lambda i: (i, 0)),
        compiler_params=pltpu.CompilerParams(
            dimension_semantics=("parallel",),   # no cross-step dependency
            vmem_limit_bytes=vmem_limit,
        ),
        cost_estimate=cost,
    )(col_ids, x, tgt2d)

    # Tiny final reduction (N f32 values) stays in the wrapper.
    return jnp.mean(row_loss)


def _reference(x, target):
    # Pure-JAX reference mirroring the PyTorch module.
    logprobs = jax.nn.log_softmax(x.astype(jnp.float32), axis=-1)
    nll = -jnp.take_along_axis(logprobs, target[:, None], axis=-1)[:, 0]
    smooth = -jnp.mean(logprobs, axis=-1)
    return jnp.mean(CONFIDENCE * nll + SMOOTHING * smooth)


if __name__ == "__main__":
    key = jax.random.PRNGKey(0)
    kx, kt = jax.random.split(key)

    # Case 1: f32 logits, forced tile_n=8 -> 3-step grid with a masked
    # remainder tile (exercises the pipeline and tail-row handling).
    N, C = 20, 128
    x = jax.random.normal(kx, (N, C), dtype=jnp.float32)
    target = jax.random.randint(kt, (N,), 0, C, dtype=jnp.int32)

    loss = label_smoothing_cross_entropy(x, target, tile_n=8)
    jax.block_until_ready(loss)
    ref = _reference(x, target)
    assert jnp.allclose(loss, ref, atol=1e-5, rtol=1e-5), (loss, ref)

    # Case 2: bf16 logits, auto-chosen tile (single tile covering all rows).
    N2, C2 = 300, 256
    kx2, kt2 = jax.random.split(kt)
    x2 = jax.random.normal(kx2, (N2, C2), dtype=jnp.float32).astype(jnp.bfloat16)
    t2 = jax.random.randint(kt2, (N2,), 0, C2, dtype=jnp.int32)

    loss2 = label_smoothing_cross_entropy(x2, t2)
    jax.block_until_ready(loss2)
    ref2 = _reference(x2, t2)
    assert jnp.allclose(loss2, ref2, atol=1e-4, rtol=1e-4), (loss2, ref2)

    print("KERNEL_OK")
</pallas_src>

<mosaic_0001>
module attributes {stable_mosaic.version = 11 : i64} {
  func.func @_ls_ce_kernel(%arg0: i32, %arg1: memref<1x128xi32, #tpu.memory_space<vmem>>, %arg2: memref<8x128xf32, #tpu.memory_space<vmem>>, %arg3: memref<8x1xi32, #tpu.memory_space<vmem>>, %arg4: memref<8x1xf32, #tpu.memory_space<vmem>>) attributes {dimension_semantics = [#tpu.dimension_semantics<parallel>], iteration_bounds = array<i64: 3>, scalar_prefetch = 0 : i64, scratch_operands = 0 : i64, tpu.core_type = #tpu.core_type<tc>, window_params = [{pipeline_mode = #tpu.pipeline_mode<synchronous>, transform_indices = @transform_0, window_bounds = array<i64: 1, 128>}, {transform_indices = @transform_1, window_bounds = array<i64: 8, 128>}, {transform_indices = @transform_2, window_bounds = array<i64: 8, 1>}, {transform_indices = @transform_3, window_bounds = array<i64: 8, 1>}]} {
    %c0 = arith.constant 0 : index
    %c0_0 = arith.constant 0 : index
    %0 = vector.load %arg2[%c0, %c0_0] : memref<8x128xf32, #tpu.memory_space<vmem>>, vector<8x128xf32>
    %c0_1 = arith.constant 0 : index
    %c0_2 = arith.constant 0 : index
    %1 = vector.load %arg3[%c0_1, %c0_2] : memref<8x1xi32, #tpu.memory_space<vmem>>, vector<8x1xi32>
    %c0_3 = arith.constant 0 : index
    %c0_4 = arith.constant 0 : index
    %2 = vector.load %arg1[%c0_3, %c0_4] : memref<1x128xi32, #tpu.memory_space<vmem>>, vector<1x128xi32>
    %cst = arith.constant dense<0xFF800000> : vector<8xf32>
    %3 = vector.multi_reduction <maximumf>, %0, %cst [1] : vector<8x128xf32> to vector<8xf32>
    %4 = vector.shape_cast %3 : vector<8xf32> to vector<8x1xf32>
    %5 = vector.broadcast %4 : vector<8x1xf32> to vector<8x128xf32>
    %6 = arith.subf %0, %5 : vector<8x128xf32>
    %7 = math.exp %6 : vector<8x128xf32>
    %cst_5 = arith.constant dense<0.000000e+00> : vector<8xf32>
    %8 = vector.multi_reduction <add>, %7, %cst_5 [1] : vector<8x128xf32> to vector<8xf32>
    %9 = vector.shape_cast %8 : vector<8xf32> to vector<8x1xf32>
    %10 = math.log %9 : vector<8x1xf32>
    %11 = arith.addf %4, %10 : vector<8x1xf32>
    %cst_6 = arith.constant dense<0.000000e+00> : vector<8xf32>
    %12 = vector.multi_reduction <add>, %0, %cst_6 [1] : vector<8x128xf32> to vector<8xf32>
    %13 = vector.shape_cast %12 : vector<8xf32> to vector<8x1xf32>
    %14 = vector.broadcast %2 : vector<1x128xi32> to vector<8x128xi32>
    %15 = vector.broadcast %1 : vector<8x1xi32> to vector<8x128xi32>
    %16 = arith.cmpi eq, %14, %15 : vector<8x128xi32>
    %cst_7 = arith.constant 0.000000e+00 : f32
    %17 = vector.broadcast %cst_7 : f32 to vector<8x128xf32>
    %18 = arith.select %16, %0, %17 : vector<8x128xi1>, vector<8x128xf32>
    %cst_8 = arith.constant dense<0.000000e+00> : vector<8xf32>
    %19 = vector.multi_reduction <add>, %18, %cst_8 [1] : vector<8x128xf32> to vector<8xf32>
    %20 = vector.shape_cast %19 : vector<8xf32> to vector<8x1xf32>
    %cst_9 = arith.constant 0.899999976 : f32
    %21 = vector.broadcast %cst_9 : f32 to vector<8x1xf32>
    %22 = arith.mulf %21, %20 : vector<8x1xf32>
    %23 = arith.subf %11, %22 : vector<8x1xf32>
    %cst_10 = arith.constant 7.812500e-04 : f32
    %24 = vector.broadcast %cst_10 : f32 to vector<8x1xf32>
    %25 = arith.mulf %24, %13 : vector<8x1xf32>
    %26 = arith.subf %23, %25 : vector<8x1xf32>
    %c0_11 = arith.constant 0 : index
    %c0_12 = arith.constant 0 : index
    %27 = vector.load %arg4[%c0_11, %c0_12] : memref<8x1xf32, #tpu.memory_space<vmem>>, vector<8x1xf32>
    tpu.vector_store %arg4[%c0_11, %c0_12], %26 {strides = array<i32>} : memref<8x1xf32, #tpu.memory_space<vmem>>, vector<8x1xf32>,
    return
  }
  func.func @transform_0(%arg0: i32) -> (i32, i32) {
    %c0_i32 = arith.constant 0 : i32
    %c0_i32_0 = arith.constant 0 : i32
    %c0_i32_1 = arith.constant 0 : i32
    return %c0_i32, %c0_i32_0 : i32, i32
  }
  func.func @transform_1(%arg0: i32) -> (i32, i32) {
    %c0_i32 = arith.constant 0 : i32
    %c0_i32_0 = arith.constant 0 : i32
    return %arg0, %c0_i32 : i32, i32
  }
  func.func @transform_2(%arg0: i32) -> (i32, i32) {
    %c0_i32 = arith.constant 0 : i32
    %c0_i32_0 = arith.constant 0 : i32
    return %arg0, %c0_i32 : i32, i32
  }
  func.func @transform_3(%arg0: i32) -> (i32, i32) {
    %c0_i32 = arith.constant 0 : i32
    %c0_i32_0 = arith.constant 0 : i32
    return %arg0, %c0_i32 : i32, i32
  }
}

</mosaic_0001>

<llo_original>
// kernel: tpu_custom_call.1
$region0: #{tpu_custom_call.1}
  #allocation0 [shape = 'u32[]', space=smem, size = 0x4, offset = 0x4, fixed_abs, tag = 'smem constant byte address 0x4 - core index']
  #allocation1 [shape = 'u32[144,128]{1,0:T(1,128)}', space=vmem, size = 0x12000, scoped, tag = 'internal scratch']
  %s0 = inlined_call_operand.vmem [shape: s32[1,128], index: 0, kind: input, shape index: {}]
  %s1 = inlined_call_operand.vmem [shape: f32[20,128], index: 1, kind: input, shape index: {}]
  %s2 = inlined_call_operand.vmem [shape: s32[20,1], index: 2, kind: input, shape index: {}]
  %s3 = inlined_call_operand.vmem [shape: f32[20,1], index: 3, kind: output, shape index: {}]
  %s4 = sld [smem:[#allocation0]]
  $region45: #{tpu_custom_call.1} parent=0
    _
  %s6 = ssub.s32 1, %s4
  %s7 = scalar_select 0, %s6, %s4
  loop: start=0, step=1, limit=5
  $region2: #{tpu_custom_call.1} parent=0 // loop_pre_header
    _
  $region3: #{tpu_custom_call.1} parent=0 // loop_header
    %s9 = sphi 0, %s13
    %p10 = scmp.ge.s32.totalorder %s9, 5
    %s17 = sphi 0, %s17
    %s19 = sphi 0, %s17
    %s20 = sphi 0, %s19
    %s34 = sphi 0, %s20
    %s40 = sphi 0, %s42
    %s43 = sphi 0, %s40
    %s44 = sphi 0, %s43
    %s60 = sphi 0, %s44
    %s66 = sphi 0, %s68
    %s69 = sphi 0, %s66
    %s70 = sphi 0, %s69
    %s86 = sphi 0, %s70
    %s92 = sphi 0, %s94
    %s95 = sphi 0, %s92
    %s96 = sphi 0, %s95
    %s112 = sphi 0, %s96
  $region4: #{tpu_custom_call.1} parent=0 // loop_header_branch
    %12 = sbr.rel (%p10) target = $region8
  $region5: #{tpu_custom_call.1} parent=0 // loop_body
    %s14 = ssub.s32 %s9, 1
    %s15 = ssub.s32 %s9, 2
    %s16 = sadd.s32 %s9, 1
    %s18 = sadd.s32 %s17, 1
    %p21 = scmp.eq.s32.totalorder %s9, 2
    %p22 = scmp.ne.s32.totalorder %s17, %s19
    %p23 = scmp.eq.s32.totalorder %s9, 0
    %p24 = por %p22, %p23
    %p25 = scmp.ne.s32.totalorder %s17, %s19
    %p26 = scmp.eq.s32.totalorder %s14, 2
    %p27 = por %p25, %p26
    %p28 = scmp.ne.s32.totalorder %s19, %s20
    %p29 = scmp.eq.s32.totalorder %s14, 0
    %p30 = por %p28, %p29
    %p31 = scmp.ne.s32.totalorder %s19, %s20
    %p32 = scmp.eq.s32.totalorder %s15, 2
    %p33 = por %p31, %p32
    %p35 = scmp.ne.s32.totalorder %s20, %s34
    %p36 = scmp.eq.s32.totalorder %s15, 0
    %p37 = por %p35, %p36
    %s38 = ssub.s32 %s9, %s16
    %p39 = scmp.eq.s32.totalorder %s38, 0
    %s41 = sadd.s32 %s40, 1
    %s42 = scalar_select %p39, %s40, %s41
    %p45 = pneg %p39
    %p46 = scmp.eq.s32.totalorder %s9, 2
    %p47 = por %p45, %p46
    %p48 = scmp.ne.s32.totalorder %s40, %s43
    %p49 = scmp.eq.s32.totalorder %s9, 0
    %p50 = por %p48, %p49
    %p51 = scmp.ne.s32.totalorder %s40, %s43
    %p52 = scmp.eq.s32.totalorder %s14, 2
    %p53 = por %p51, %p52
    %p54 = scmp.ne.s32.totalorder %s43, %s44
    %p55 = scmp.eq.s32.totalorder %s14, 0
    %p56 = por %p54, %p55
    %p57 = scmp.ne.s32.totalorder %s43, %s44
    %p58 = scmp.eq.s32.totalorder %s15, 2
    %p59 = por %p57, %p58
    %p61 = scmp.ne.s32.totalorder %s44, %s60
    %p62 = scmp.eq.s32.totalorder %s15, 0
    %p63 = por %p61, %p62
    %s64 = ssub.s32 %s9, %s16
    %p65 = scmp.eq.s32.totalorder %s64, 0
    %s67 = sadd.s32 %s66, 1
    %s68 = scalar_select %p65, %s66, %s67
    %p71 = pneg %p65
    %p72 = scmp.eq.s32.totalorder %s9, 2
    %p73 = por %p71, %p72
    %p74 = scmp.ne.s32.totalorder %s66, %s69
    %p75 = scmp.eq.s32.totalorder %s9, 0
    %p76 = por %p74, %p75
    %p77 = scmp.ne.s32.totalorder %s66, %s69
    %p78 = scmp.eq.s32.totalorder %s14, 2
    %p79 = por %p77, %p78
    %p80 = scmp.ne.s32.totalorder %s69, %s70
    %p81 = scmp.eq.s32.totalorder %s14, 0
    %p82 = por %p80, %p81
    %p83 = scmp.ne.s32.totalorder %s69, %s70
    %p84 = scmp.eq.s32.totalorder %s15, 2
    %p85 = por %p83, %p84
    %p87 = scmp.ne.s32.totalorder %s70, %s86
    %p88 = scmp.eq.s32.totalorder %s15, 0
    %p89 = por %p87, %p88
    %s90 = ssub.s32 %s9, %s16
    %p91 = scmp.eq.s32.totalorder %s90, 0
    %s93 = sadd.s32 %s92, 1
    %s94 = scalar_select %p91, %s92, %s93
    %p97 = pneg %p91
    %p98 = scmp.eq.s32.totalorder %s9, 2
    %p99 = por %p97, %p98
    %p100 = scmp.ne.s32.totalorder %s92, %s95
    %p101 = scmp.eq.s32.totalorder %s9, 0
    %p102 = por %p100, %p101
    %p103 = scmp.ne.s32.totalorder %s92, %s95
    %p104 = scmp.eq.s32.totalorder %s14, 2
    %p105 = por %p103, %p104
    %p106 = scmp.ne.s32.totalorder %s95, %s96
    %p107 = scmp.eq.s32.totalorder %s14, 0
    %p108 = por %p106, %p107
    %p109 = scmp.ne.s32.totalorder %s95, %s96
    %p110 = scmp.eq.s32.totalorder %s15, 2
    %p111 = por %p109, %p110
    %p113 = scmp.ne.s32.totalorder %s96, %s112
    %p114 = scmp.eq.s32.totalorder %s15, 0
    %p115 = por %p113, %p114
    %p116 = scmp.le.s32.totalorder 1, %s9
    %p117 = scmp.lt.s32.totalorder %s9, 4
    %p118 = pnand %p116, %p117
    %p119 = pneg %p118
    // Predicated region
    $region9: #{tpu_custom_call.1} parent=5 // pred_check
      _
    $region10: #{tpu_custom_call.1} parent=5 // pred_check_branch
      %121 = sbr.rel (%p118) target = $region12
    $region11: #{tpu_custom_call.1} parent=5 // pred_region
      %s122 = ssub.s32 %s9, 1
      // Predicated region
      $region13: #{tpu_custom_call.1} parent=11 // pred_check
        %p123 = pneg %p30
      $region14: #{tpu_custom_call.1} parent=11 // pred_check_branch
        %125 = sbr.rel (%p123) target = $region16
      $region15: #{tpu_custom_call.1} parent=11 // pred_region
        _
      $region16: #{tpu_custom_call.1} parent=11 // pred_fallthru
        _
    $region12: #{tpu_custom_call.1} parent=5 // pred_fallthru
      _
    %p126 = scmp.lt.s32.totalorder %s9, 3
    // Predicated region
    $region17: #{tpu_custom_call.1} parent=5 // pred_check
      %p127 = pneg %p126
    $region18: #{tpu_custom_call.1} parent=5 // pred_check_branch
      %129 = sbr.rel (%p127) target = $region20
    $region19: #{tpu_custom_call.1} parent=5 // pred_region
      // Predicated region
      $region21: #{tpu_custom_call.1} parent=19 // pred_check
        %p130 = pneg %p50
      $region22: #{tpu_custom_call.1} parent=19 // pred_check_branch
        %132 = sbr.rel (%p130) target = $region24
      $region23: #{tpu_custom_call.1} parent=19 // pred_region
        %p133 = scmp.lt.s32.totalorder %s9, 2
        %s134 = scalar_select %p133, %s9, 2
        %s135 = smul.addr %s134, 8
        %s136 = scalar_lea.vmem %s1, %s135
      $region24: #{tpu_custom_call.1} parent=19 // pred_fallthru
        _
      // Predicated region
      $region25: #{tpu_custom_call.1} parent=19 // pred_check
        %p137 = pneg %p76
      $region26: #{tpu_custom_call.1} parent=19 // pred_check_branch
        %139 = sbr.rel (%p137) target = $region28
      $region27: #{tpu_custom_call.1} parent=19 // pred_region
        %p140 = scmp.lt.s32.totalorder %s9, 2
        %s141 = scalar_select %p140, %s9, 2
        %s142 = smul.addr %s141, 8
        %s143 = scalar_lea.vmem %s2, %s142
      $region28: #{tpu_custom_call.1} parent=19 // pred_fallthru
        _
    $region20: #{tpu_custom_call.1} parent=5 // pred_fallthru
      _
    %p144 = scmp.le.s32.totalorder 1, %s9
    %p145 = scmp.lt.s32.totalorder %s9, 4
    %p146 = pnand %p144, %p145
    %p147 = pneg %p146
    // Predicated region
    $region29: #{tpu_custom_call.1} parent=5 // pred_check
      _
    $region30: #{tpu_custom_call.1} parent=5 // pred_check_branch
      %149 = sbr.rel (%p146) target = $region32
    $region31: #{tpu_custom_call.1} parent=5 // pred_region
      %s150 = ssub.s32 %s9, 1
      %p151 = pneg %p30
      %p152 = pneg %p27
      %p153 = scmp.lt.s32.totalorder %s14, 2
      %s154 = scalar_select %p153, %s14, 2
      %s155 = smul.addr %s154, 8
      %s156 = scalar_lea.vmem %s1, %s155
      %p157 = pneg %p56
      %p158 = pneg %p53
      %p159 = scmp.lt.s32.totalorder %s14, 2
      %s160 = scalar_select %p159, %s14, 2
      %s161 = smul.addr %s160, 8
      %s162 = scalar_lea.vmem %s2, %s161
      %p163 = pneg %p82
      %p164 = pneg %p79
      %p165 = pneg %p108
      %p166 = pneg %p105
      %p167 = scmp.lt.s32.totalorder %s14, 2
      %s168 = scalar_select %p167, %s14, 2
      %s169 = smul.addr %s168, 8
      %s170 = scalar_lea.vmem %s3, %s169
      %p171 = scmp.lt.s32.totalorder %s14, 2
      %s172 = scalar_select %p171, %s14, 2
      %s173 = smul.addr %s172, 8
      %s174 = scalar_lea.vmem %s1, %s173
      %p175 = scmp.lt.s32.totalorder %s14, 2
      %s176 = scalar_select %p175, %s14, 2
      %s177 = smul.addr %s176, 8
      %s178 = scalar_lea.vmem %s2, %s177
      %p179 = scmp.lt.s32.totalorder %s14, 2
      %s180 = scalar_select %p179, %s14, 2
      %s181 = smul.addr %s180, 8
      %s182 = scalar_lea.vmem %s3, %s181
      %v183 = vld [vmem:[%s174] sm:$0xff]
      %v184 = vld [vmem:[%s178] sm:$0xff]
      %v185 = vld [vmem:[%s0] sm:$0x1]
      %186 = vmax.xlane.f32.xlu0 %v183
      %v187 = vpop.xlane.xlu0 %186
      %v188 = vsub.f32 %v183, %v187
      %v189 = vmul.f32 %v188, 1.442695
      %v190 = vpow.pop %v189
      %191 = vadd.xlane.f32.xlu0 %v190
      %v192 = vpop.xlane.xlu0 %191
      %v193 = vlog2.pop %v192
      %v194 = vmul.f32 %v193, 0.6931472
      %v195 = vadd.f32 %v187, %v194
      %196 = vadd.xlane.f32.xlu0 %v183
      %v197 = vpop.xlane.xlu0 %196
      %v198 = vlaneseq
      %v199 = vshrl.u32 %v198, 7
      %v200 = vsub.s32 0, %v199
      %v201 = vrot.slane %v185, %v200
      %202 = vset.pattern.permute.xlu0 0
      %203 = vperm.xlu0 %202, %v184
      %v204 = vpop.permute.xlu0 %203
      %vm205 = vcmp.eq.s32.totalorder %v201, %v204
      %v206 = vsel %vm205, %v183, 0.0
      %207 = vadd.xlane.f32.xlu0 %v206
      %v208 = vpop.xlane.xlu0 %207
      %v209 = vmul.f32 %v208, 0.9
      %v210 = vsub.f32 %v195, %v209
      %v211 = vmul.f32 %v197, 0.00078125
      %v212 = vsub.f32 %v210, %v211
      %vm213 = vcmask 7168
      %214 = vst.msk [vmem:[%s182] sm:$0xff] %vm213, %v212
      %p215 = scmp.lt.s32.totalorder %s14, 2
      %s216 = scalar_select %p215, %s14, 2
      %s217 = smul.addr %s216, 8
      %s218 = scalar_lea.vmem %s3, %s217
      // Predicated region
      $region33: #{tpu_custom_call.1} parent=31 // pred_check
        %p219 = pneg %p105
      $region34: #{tpu_custom_call.1} parent=31 // pred_check_branch
        %221 = sbr.rel (%p219) target = $region36
      $region35: #{tpu_custom_call.1} parent=31 // pred_region
        _
      $region36: #{tpu_custom_call.1} parent=31 // pred_fallthru
        _
    $region32: #{tpu_custom_call.1} parent=5 // pred_fallthru
      _
    %p222 = scmp.le.s32.totalorder 2, %s9
    // Predicated region
    $region37: #{tpu_custom_call.1} parent=5 // pred_check
      %p223 = pneg %p222
    $region38: #{tpu_custom_call.1} parent=5 // pred_check_branch
      %225 = sbr.rel (%p223) target = $region40
    $region39: #{tpu_custom_call.1} parent=5 // pred_region
      %s226 = ssub.s32 %s9, 2
      // Predicated region
      $region41: #{tpu_custom_call.1} parent=39 // pred_check
        %p227 = pneg %p111
      $region42: #{tpu_custom_call.1} parent=39 // pred_check_branch
        %229 = sbr.rel (%p227) target = $region44
      $region43: #{tpu_custom_call.1} parent=39 // pred_region
        %p230 = scmp.lt.s32.totalorder %s15, 2
        %s231 = scalar_select %p230, %s15, 2
        %s232 = smul.addr %s231, 8
        %s233 = scalar_lea.vmem %s3, %s232
      $region44: #{tpu_custom_call.1} parent=39 // pred_fallthru
        _
    $region40: #{tpu_custom_call.1} parent=5 // pred_fallthru
      _
  $region6: #{tpu_custom_call.1} parent=0 // loop_footer
    %s13 = sadd.s32 1, %s9
  $region7: #{tpu_custom_call.1} parent=0 // loop_footer_branch
    %8 = sbr.rel target = $region3
  $region8: #{tpu_custom_call.1} parent=0 // loop_exit
    _

</llo_original>
